<compile_context>
chip_gen: v6e
topology: v6e:2x2x1
jax: 0.10.0
libtpu: 0.0.40
codegen_flags: <defaults>
</compile_context>

<pallas_src>
import functools

import jax
import jax.numpy as jnp
from jax import lax
from jax.experimental import pallas as pl
from jax.experimental.pallas import tpu as pltpu


_SQRT_HALF = 0.7071067811865476
_SQRT_2_OVER_PI = 0.7978845608028654


def _gelu(h, approx):
    """GELU on an f32 tile.

    approx=True uses the tanh form (routes to the EUP, a separate VLIW slot)
    instead of the exact erf VPU polynomial; numerics differ slightly from the
    torch reference, so it is opt-in.
    """
    if approx:
        return 0.5 * h * (1.0 + jnp.tanh(
            jnp.float32(_SQRT_2_OVER_PI) * (h + jnp.float32(0.044715) * h * h * h)))
    return 0.5 * h * (1.0 + lax.erf(h * jnp.float32(_SQRT_HALF)))


def _ffn_kernel_inplace(x_ref, w1t_ref, w2t_ref, o_ref, *, approx_gelu):
    """f32 output: accumulate straight into the resident output block.

    x_ref   : (tm, d_model)   VMEM, native dtype
    w1t_ref : (d_model, tf)   VMEM (W1^T, d_ff slab k)
    w2t_ref : (tf, d_model)   VMEM (W2^T, d_ff slab k)
    o_ref   : (tm, d_model)   VMEM f32, resident across the k (d_ff) axis
    """
    k = pl.program_id(1)

    @pl.when(k == 0)
    def _init():
        o_ref[...] = jnp.zeros_like(o_ref)

    h = jnp.dot(x_ref[...], w1t_ref[...], preferred_element_type=jnp.float32)
    h = _gelu(h, approx_gelu)
    o_ref[...] += jnp.dot(h.astype(w2t_ref.dtype), w2t_ref[...],
                          preferred_element_type=jnp.float32)


def _ffn_kernel_scratch(x_ref, w1t_ref, w2t_ref, o_ref, acc_ref, *, approx_gelu):
    """Narrow output dtype (e.g. bf16): f32 accumulator scratch + final cast."""
    k = pl.program_id(1)

    @pl.when(k == 0)
    def _init():
        acc_ref[...] = jnp.zeros_like(acc_ref)

    h = jnp.dot(x_ref[...], w1t_ref[...], preferred_element_type=jnp.float32)
    h = _gelu(h, approx_gelu)
    acc_ref[...] += jnp.dot(h.astype(w2t_ref.dtype), w2t_ref[...],
                            preferred_element_type=jnp.float32)

    @pl.when(k == pl.num_programs(1) - 1)
    def _finalize():
        o_ref[...] = acc_ref[...].astype(o_ref.dtype)


def _round_up(x, m):
    return ((x + m - 1) // m) * m


def _sublane_granule(dtype):
    itemsize = jnp.dtype(dtype).itemsize
    return {4: 8, 2: 16, 1: 32}.get(itemsize, 8)


def _pick_ff_tile(requested, d_ff, granule=128):
    """Largest lane-aligned tile <= requested that exactly divides d_ff.

    The reduction axis must tile exactly (a partial d_ff block would add
    garbage into valid rows), so fall back to the full dimension otherwise.
    """
    if d_ff <= requested:
        return d_ff
    t = (requested // granule) * granule
    while t >= granule:
        if d_ff % t == 0:
            return t
        t -= granule
    return d_ff


def _vmem_capacity_bytes():
    try:
        return int(pltpu.get_tpu_info().vmem_capacity_bytes)
    except Exception:
        return 64 << 20  # conservative fallback (v7x per-TensorCore VMEM)


def _working_set_bytes(tm, tf, d_model, x_isz, w_isz, o_isz, need_acc):
    bx = tm * d_model * x_isz
    bw = 2 * tf * d_model * w_isz          # W1^T slab + W2^T slab
    bo = tm * d_model * o_isz
    bacc = tm * d_model * 4 if need_acc else 0
    return 2 * (bx + bw + bo) + bacc       # double-buffered pipeline + accumulator


@functools.partial(jax.jit, static_argnames=("tm", "tf", "approx_gelu"))
def ffn_pallas(x, w1t, w2t, *, tm=512, tf=1024, approx_gelu=False):
    """Fused FFN: gelu(x @ w1t) @ w2t.

    x   : (..., d_model)
    w1t : (d_model, d_ff)   -- W1 pre-transposed (once, at load time)
    w2t : (d_ff, d_model)   -- W2 pre-transposed
    """
    orig_shape = x.shape
    d_model = orig_shape[-1]
    d_ff = w1t.shape[1]

    x2d = x.reshape(-1, d_model)
    m = x2d.shape[0]

    granule = _sublane_granule(x.dtype)

    # ---- Row tile: large for weight-stream arithmetic intensity, but at
    # least two row tiles (v7x dual-TC megacore) once there is enough work.
    if m <= tm:
        if m >= 256:
            tm_eff = _round_up(pl.cdiv(m, 2), granule)
        else:
            tm_eff = m                      # block == full dim, always legal
    else:
        tm_eff = max(granule, (tm // granule) * granule)

    tf_eff = _pick_ff_tile(tf, d_ff)

    out_dtype = x.dtype
    accumulate_in_out = jnp.dtype(out_dtype) == jnp.dtype(jnp.float32)

    x_isz = jnp.dtype(x.dtype).itemsize
    w_isz = jnp.dtype(w1t.dtype).itemsize
    o_isz = jnp.dtype(out_dtype).itemsize

    # ---- Generation-aware VMEM budget (128 MiB on v5e/v6e, 64 MiB/TC on v7x).
    budget = _vmem_capacity_bytes() - (8 << 20)
    # Shrink tf first (preserves per-row-tile weight-stream intensity), then
    # tm, until the double-buffered working set fits the budget.
    while _working_set_bytes(tm_eff, tf_eff, d_model, x_isz, w_isz, o_isz,
                             not accumulate_in_out) > budget:
        if tf_eff > 128:
            new_tf = _pick_ff_tile(max(128, tf_eff // 2), d_ff)
            if new_tf < tf_eff:
                tf_eff = new_tf
                continue
        if tm_eff > granule:
            tm_eff = max(granule, _round_up(tm_eff // 2, granule))
            continue
        break

    grid = (pl.cdiv(m, tm_eff), d_ff // tf_eff)

    ws = _working_set_bytes(tm_eff, tf_eff, d_model, x_isz, w_isz, o_isz,
                            not accumulate_in_out)
    vmem_limit = min(max(ws + (2 << 20), 16 << 20), budget)

    if accumulate_in_out:
        kernel = functools.partial(_ffn_kernel_inplace, approx_gelu=approx_gelu)
        scratch_shapes = []
    else:
        kernel = functools.partial(_ffn_kernel_scratch, approx_gelu=approx_gelu)
        scratch_shapes = [pltpu.VMEM((tm_eff, d_model), jnp.float32)]

    out2d = pl.pallas_call(
        kernel,
        out_shape=jax.ShapeDtypeStruct((m, d_model), out_dtype),
        grid_spec=pltpu.PrefetchScalarGridSpec(
            num_scalar_prefetch=0,
            grid=grid,
            in_specs=[
                pl.BlockSpec((tm_eff, d_model), lambda i, k: (i, 0)),
                pl.BlockSpec((d_model, tf_eff), lambda i, k: (0, k)),
                pl.BlockSpec((tf_eff, d_model), lambda i, k: (k, 0)),
            ],
            out_specs=pl.BlockSpec((tm_eff, d_model), lambda i, k: (i, 0)),
            scratch_shapes=scratch_shapes,
        ),
        compiler_params=pltpu.CompilerParams(
            dimension_semantics=("parallel", "arbitrary"),
            vmem_limit_bytes=int(vmem_limit),
        ),
    )(x2d, w1t, w2t)

    return out2d.reshape(orig_shape)


def prepare_ffn_weights(w1, w2, dtype=None):
    """One-time weight prep (hoisted out of the per-call hot path).

    w1: (d_ff, d_model) nn.Linear layout; w2: (d_model, d_ff).
    Returns (w1t, w2t) with the contraction dim leading.  Pass dtype=bf16 to
    use the MXU's native high-rate path (accuracy tradeoff vs the f32 module).
    """
    w1t = jnp.asarray(w1).T
    w2t = jnp.asarray(w2).T
    if dtype is not None:
        w1t = w1t.astype(dtype)
        w2t = w2t.astype(dtype)
    return w1t, w2t


def ffn_reference(x, w1, w2):
    h = x @ w1.T
    h = 0.5 * h * (1.0 + lax.erf(h / jnp.sqrt(2.0)))
    return h @ w2.T


if __name__ == "__main__":
    key = jax.random.PRNGKey(0)

    # --- Case 1: small module-sized shapes (single row tile, f32 in-place acc).
    batch, seq, d_model, d_ff = 2, 8, 32, 128
    kx, kw1, kw2, key = jax.random.split(key, 4)
    x = jax.random.normal(kx, (batch, seq, d_model), dtype=jnp.float32)
    w1 = jax.random.normal(kw1, (d_ff, d_model), dtype=jnp.float32) * 0.05
    w2 = jax.random.normal(kw2, (d_model, d_ff), dtype=jnp.float32) * 0.05

    w1t, w2t = prepare_ffn_weights(w1, w2)
    out = jax.block_until_ready(ffn_pallas(x, w1t, w2t))
    ref = ffn_reference(x, w1, w2)
    assert out.shape == ref.shape == (batch, seq, d_model)
    assert jnp.allclose(out, ref, atol=1e-4, rtol=1e-4), "mismatch (small f32)"

    # --- Case 2: partial edge row block (m=300, no host-side pad), two row tiles.
    batch2, seq2, d_model2, d_ff2 = 3, 100, 128, 512
    kx2, kw1b, kw2b, key = jax.random.split(key, 4)
    x2 = jax.random.normal(kx2, (batch2, seq2, d_model2), dtype=jnp.float32)
    w1b = jax.random.normal(kw1b, (d_ff2, d_model2), dtype=jnp.float32) * 0.03
    w2b = jax.random.normal(kw2b, (d_model2, d_ff2), dtype=jnp.float32) * 0.03

    w1bt, w2bt = prepare_ffn_weights(w1b, w2b)
    out2 = jax.block_until_ready(ffn_pallas(x2, w1bt, w2bt))
    ref2 = ffn_reference(x2, w1b, w2b)
    assert out2.shape == ref2.shape == (batch2, seq2, d_model2)
    assert jnp.allclose(out2, ref2, atol=1e-3, rtol=1e-3), "mismatch (partial block)"

    # --- Case 3: bf16 path (f32 scratch accumulator, sublane granule 16).
    batch3, seq3, d_model3, d_ff3 = 2, 24, 64, 256
    kx3, kw1c, kw2c, key = jax.random.split(key, 4)
    x3 = jax.random.normal(kx3, (batch3, seq3, d_model3),
                           dtype=jnp.float32).astype(jnp.bfloat16)
    w1c = (jax.random.normal(kw1c, (d_ff3, d_model3), dtype=jnp.float32)
           * 0.05).astype(jnp.bfloat16)
    w2c = (jax.random.normal(kw2c, (d_model3, d_ff3), dtype=jnp.float32)
           * 0.05).astype(jnp.bfloat16)

    w1ct, w2ct = prepare_ffn_weights(w1c, w2c)
    out3 = jax.block_until_ready(ffn_pallas(x3, w1ct, w2ct))
    ref3 = ffn_reference(x3.astype(jnp.float32), w1c.astype(jnp.float32),
                         w2c.astype(jnp.float32))
    assert out3.dtype == jnp.bfloat16 and out3.shape == ref3.shape
    assert jnp.allclose(out3.astype(jnp.float32), ref3, atol=3e-2, rtol=3e-2), \
        "mismatch (bf16)"

    print("KERNEL_OK")
</pallas_src>

<mosaic_0001>
module attributes {stable_mosaic.version = 11 : i64} {
  func.func @_ffn_kernel_inplace(%arg0: i32, %arg1: i32, %arg2: memref<16x32xf32, #tpu.memory_space<vmem>>, %arg3: memref<32x128xf32, #tpu.memory_space<vmem>>, %arg4: memref<128x32xf32, #tpu.memory_space<vmem>>, %arg5: memref<16x32xf32, #tpu.memory_space<vmem>>) attributes {dimension_semantics = [#tpu.dimension_semantics<parallel>, #tpu.dimension_semantics<arbitrary>], iteration_bounds = array<i64: 1, 1>, scalar_prefetch = 0 : i64, scratch_operands = 0 : i64, tpu.core_type = #tpu.core_type<tc>, window_params = [{transform_indices = @transform_0, window_bounds = array<i64: 16, 32>}, {transform_indices = @transform_1, window_bounds = array<i64: 32, 128>}, {transform_indices = @transform_2, window_bounds = array<i64: 128, 32>}, {transform_indices = @transform_3, window_bounds = array<i64: 16, 32>}]} {
    %c0_i32 = arith.constant 0 : i32
    %0 = arith.cmpi eq, %arg1, %c0_i32 : i32
    %1 = arith.extui %0 : i1 to i32
    %c0_i32_0 = arith.constant 0 : i32
    %2 = arith.cmpi ne, %1, %c0_i32_0 : i32
    scf.if %2 {
      %cst_14 = arith.constant 0.000000e+00 : f32
      %19 = vector.broadcast %cst_14 : f32 to vector<16x32xf32>
      %c0_15 = arith.constant 0 : index
      %c0_16 = arith.constant 0 : index
      %20 = vector.load %arg5[%c0_15, %c0_16] : memref<16x32xf32, #tpu.memory_space<vmem>>, vector<16x32xf32>
      tpu.vector_store %arg5[%c0_15, %c0_16], %19 {strides = array<i32>} : memref<16x32xf32, #tpu.memory_space<vmem>>, vector<16x32xf32>,
    } else {
    }
    %c0 = arith.constant 0 : index
    %c0_1 = arith.constant 0 : index
    %3 = vector.load %arg2[%c0, %c0_1] : memref<16x32xf32, #tpu.memory_space<vmem>>, vector<16x32xf32>
    %c0_2 = arith.constant 0 : index
    %c0_3 = arith.constant 0 : index
    %4 = vector.load %arg3[%c0_2, %c0_3] : memref<32x128xf32, #tpu.memory_space<vmem>>, vector<32x128xf32>
    %cst = arith.constant dense<0.000000e+00> : vector<16x128xf32>
    %5 = tpu.matmul %3, %4, %cst {dimension_numbers = #tpu.dot_dimension_numbers<[1], [0], [0], [1], [0, 0, 1, 1], [], []>} : vector<16x32xf32>, vector<32x128xf32>, vector<16x128xf32> -> vector<16x128xf32>
    %cst_4 = arith.constant 5.000000e-01 : f32
    %6 = vector.broadcast %cst_4 : f32 to vector<16x128xf32>
    %7 = arith.mulf %6, %5 : vector<16x128xf32>
    %cst_5 = arith.constant 0.707106769 : f32
    %8 = vector.broadcast %cst_5 : f32 to vector<16x128xf32>
    %9 = arith.mulf %5, %8 : vector<16x128xf32>
    %10 = math.erf %9 : vector<16x128xf32>
    %cst_6 = arith.constant 1.000000e+00 : f32
    %11 = vector.broadcast %cst_6 : f32 to vector<16x128xf32>
    %12 = arith.addf %11, %10 : vector<16x128xf32>
    %13 = arith.mulf %7, %12 : vector<16x128xf32>
    %c0_7 = arith.constant 0 : index
    %c0_8 = arith.constant 0 : index
    %14 = vector.load %arg5[%c0_7, %c0_8] : memref<16x32xf32, #tpu.memory_space<vmem>>, vector<16x32xf32>
    %c0_9 = arith.constant 0 : index
    %c0_10 = arith.constant 0 : index
    %15 = vector.load %arg4[%c0_9, %c0_10] : memref<128x32xf32, #tpu.memory_space<vmem>>, vector<128x32xf32>
    %cst_11 = arith.constant dense<0.000000e+00> : vector<16x32xf32>
    %16 = tpu.matmul %13, %15, %cst_11 {dimension_numbers = #tpu.dot_dimension_numbers<[1], [0], [0], [1], [0, 0, 1, 1], [], []>} : vector<16x128xf32>, vector<128x32xf32>, vector<16x32xf32> -> vector<16x32xf32>
    %17 = arith.addf %14, %16 : vector<16x32xf32>
    %c0_12 = arith.constant 0 : index
    %c0_13 = arith.constant 0 : index
    %18 = vector.load %arg5[%c0_12, %c0_13] : memref<16x32xf32, #tpu.memory_space<vmem>>, vector<16x32xf32>
    tpu.vector_store %arg5[%c0_12, %c0_13], %17 {strides = array<i32>} : memref<16x32xf32, #tpu.memory_space<vmem>>, vector<16x32xf32>,
    return
  }
  func.func @transform_0(%arg0: i32, %arg1: i32) -> (i32, i32) {
    %c0_i32 = arith.constant 0 : i32
    %c0_i32_0 = arith.constant 0 : i32
    return %arg0, %c0_i32 : i32, i32
  }
  func.func @transform_1(%arg0: i32, %arg1: i32) -> (i32, i32) {
    %c0_i32 = arith.constant 0 : i32
    %c0_i32_0 = arith.constant 0 : i32
    return %c0_i32, %arg1 : i32, i32
  }
  func.func @transform_2(%arg0: i32, %arg1: i32) -> (i32, i32) {
    %c0_i32 = arith.constant 0 : i32
    %c0_i32_0 = arith.constant 0 : i32
    return %arg1, %c0_i32 : i32, i32
  }
  func.func @transform_3(%arg0: i32, %arg1: i32) -> (i32, i32) {
    %c0_i32 = arith.constant 0 : i32
    %c0_i32_0 = arith.constant 0 : i32
    return %arg0, %c0_i32 : i32, i32
  }
}

</mosaic_0001>

<llo_original>
// kernel: ffn_pallas.1
$region0: #{ffn_pallas.1}
  #allocation0 [shape = 'u32[]', space=smem, size = 0x4, offset = 0x4, fixed_abs, tag = 'smem constant byte address 0x4 - core index']
  #allocation1 [shape = 'u32[144,128]{1,0:T(1,128)}', space=vmem, size = 0x12000, scoped, tag = 'internal scratch']
  %s0 = inlined_call_operand.vmem [shape: f32[16,32], index: 0, kind: input, shape index: {}]
  %s1 = inlined_call_operand.vmem [shape: f32[32,128], index: 1, kind: input, shape index: {}]
  %s2 = inlined_call_operand.vmem [shape: f32[128,32], index: 2, kind: input, shape index: {}]
  %s3 = inlined_call_operand.hbm [shape: f32[16,32], index: 3, kind: output, shape index: {}]
  %s4 = sld [smem:[#allocation0]]
  $region26: #{ffn_pallas.1} parent=0
    _
  %s6 = ssub.s32 1, %s4
  %s7 = scalar_select 0, %s6, %s4
  $region1: #{ffn_pallas.1} parent=0
    #allocation2 [shape = 'u8[8192]{0}', space=vmem, size = 0x2000, scoped, tag = 'output window, operand 0, single buffered']
    #allocation3 [shape = 's32[1]{0}', space=sflag, size = 0x4, scoped, tag = 'scoped memory for ffn_pallas.1']
    %8 = vsyncpa [#allocation3], 0
    // Predicated region
    $region2: #{ffn_pallas.1} parent=1 // pred_check
      _
    $region3: #{ffn_pallas.1} parent=1 // pred_check_branch
      %10 = sbr.rel (0) target = $region5
    $region4: #{ffn_pallas.1} parent=1 // pred_region
      _
    $region5: #{ffn_pallas.1} parent=1 // pred_fallthru
      _
    // Predicated region
    $region6: #{ffn_pallas.1} parent=1 // pred_check
      _
    $region7: #{ffn_pallas.1} parent=1 // pred_check_branch
      %12 = sbr.rel (0) target = $region9
    $region8: #{ffn_pallas.1} parent=1 // pred_region
      _
    $region9: #{ffn_pallas.1} parent=1 // pred_fallthru
      _
    // Predicated region
    $region10: #{ffn_pallas.1} parent=1 // pred_check
      _
    $region11: #{ffn_pallas.1} parent=1 // pred_check_branch
      %14 = sbr.rel (0) target = $region13
    $region12: #{ffn_pallas.1} parent=1 // pred_region
      _
    $region13: #{ffn_pallas.1} parent=1 // pred_fallthru
      _
    %p15 = scmp.eq.s32.totalorder 0, 0
    // Predicated region
    $region14: #{ffn_pallas.1} parent=1 // pred_check
      %p16 = pneg %p15
    $region15: #{ffn_pallas.1} parent=1 // pred_check_branch
      %18 = sbr.rel (%p16) target = $region17
    $region16: #{ffn_pallas.1} parent=1 // pred_region
      %vm19 = vcmask 261120
      %20 = vst.msk [vmem:[#allocation2] sm:$0xff] %vm19, 0.0
      %21 = vst.msk [vmem:[#allocation2 + $0x8] sm:$0xff] %vm19, 0.0
    $region17: #{ffn_pallas.1} parent=1 // pred_fallthru
      _
    %v22 = vld [vmem:[%s0] sm:$0xff]
    %v23 = vld [vmem:[%s0 + $0x8] sm:$0xff]
    %v24 = vld [vmem:[%s1] sm:$0xff]
    %v25 = vld [vmem:[%s1 + $0x8] sm:$0xff]
    %v26 = vld [vmem:[%s1 + $0x10] sm:$0xff]
    %v27 = vld [vmem:[%s1 + $0x18] sm:$0xff]
    %vm28 = vcmask 261120
    %v30 = vsel %vm28, %v22, 0
    %v33 = vsel %vm28, %v23, 0
    %35 = vmatprep.subr.mxu0 0.0
    %36 = vmatpush1.msra.mxu0 0.0
    %37 = vmatprep.subr.mxu0 0.0
    %38 = vmatpush1.msra.mxu0 0.0
    %39 = vmatprep.subr.mxu0 0.0
    %40 = vmatpush1.msra.mxu0 0.0
    %41 = vmatprep.subr.mxu0 0.0
    %42 = vmatpush1.msra.mxu0 0.0
    %43 = vmatprep.subr.mxu0 0.0
    %44 = vmatpush1.msra.mxu0 0.0
    %45 = vmatprep.subr.mxu0 0.0
    %46 = vmatpush1.msra.mxu0 0.0
    %47 = vmatprep.subr.mxu0 0.0
    %48 = vmatpush1.msra.mxu0 0.0
    %49 = vmatprep.subr.mxu0 0.0
    %50 = vmatpush1.msra.mxu0 0.0
    %51 = vmatprep.subr.mxu0 0.0
    %52 = vmatpush1.msra.mxu0 0.0
    %53 = vmatprep.subr.mxu0 0.0
    %54 = vmatpush1.msra.mxu0 0.0
    %55 = vmatprep.subr.mxu0 0.0
    %56 = vmatpush1.msra.mxu0 0.0
    %57 = vmatprep.subr.mxu0 0.0
    %58 = vmatpush1.msra.mxu0 0.0
    %59 = vmatprep.subr.mxu0 0.0
    %60 = vmatpush1.msra.mxu0 %v27
    %61 = vmatprep.subr.mxu0 0.0
    %62 = vmatpush1.msra.mxu0 %v26
    %63 = vmatprep.subr.mxu0 0.0
    %64 = vmatpush1.msra.mxu0 %v25
    %65 = vmatprep.subr.mxu0 0.0
    %66 = vmatpush1.msra.mxu0 %v24
    %67 = vmatprep.subr.mxu0 0.0
    %68 = vmatpush2.msra.mxu0 0.0
    %69 = vmatprep.subr.mxu0 0.0
    %70 = vmatpush2.msra.mxu0 0.0
    %71 = vmatprep.subr.mxu0 0.0
    %72 = vmatpush2.msra.mxu0 0.0
    %73 = vmatprep.subr.mxu0 0.0
    %74 = vmatpush2.msra.mxu0 0.0
    %75 = vmatprep.subr.mxu0 0.0
    %76 = vmatpush2.msra.mxu0 0.0
    %77 = vmatprep.subr.mxu0 0.0
    %78 = vmatpush2.msra.mxu0 0.0
    %79 = vmatprep.subr.mxu0 0.0
    %80 = vmatpush2.msra.mxu0 0.0
    %81 = vmatprep.subr.mxu0 0.0
    %82 = vmatpush2.msra.mxu0 0.0
    %83 = vmatprep.subr.mxu0 0.0
    %84 = vmatpush2.msra.mxu0 0.0
    %85 = vmatprep.subr.mxu0 0.0
    %86 = vmatpush2.msra.mxu0 0.0
    %87 = vmatprep.subr.mxu0 0.0
    %88 = vmatpush2.msra.mxu0 0.0
    %89 = vmatprep.subr.mxu0 0.0
    %90 = vmatpush2.msra.mxu0 0.0
    %91 = vmatprep.subr.mxu0 0.0
    %92 = vmatpush2.msra.mxu0 0.0
    %93 = vmatprep.subr.mxu0 0.0
    %94 = vmatpush2.msra.mxu0 0.0
    %95 = vmatprep.subr.mxu0 0.0
    %96 = vmatpush2.msra.mxu0 0.0
    %97 = vmatprep.subr.mxu0 0.0
    %98 = vmatpush2.msra.mxu0 0.0
    %99 = vmatprep.mubr.f32.mxu0 0.0
    %100 = vmatmul.mubr.f32.gmra.mxu0 %v30
    %v101 = vpop.f32.mrf.mxu0
    %v102 = vadd.f32 0.0, %v101
    %v103 = vpop.f32.mrf.mxu0
    %104 = vmatprep.mubr.f32.mxu0 0.0
    %105 = vmatmul.mubr.f32.gmra.mxu0 %v33
    %v106 = vpop.f32.mrf.mxu0
    %v107 = vadd.f32 0.0, %v106
    %v108 = vpop.f32.mrf.mxu0
    %109 = vdwg.mxu0
    %v110 = vmul.f32 %v102, 0.5
    %v111 = vmul.f32 %v107, 0.5
    %v112 = vmul.f32 %v102, 0.70710677
    %v113 = vmul.f32 %v107, 0.70710677
    %v114 = verf.f32.pop %v112
    %v115 = verf.f32.pop %v113
    %v116 = vadd.f32 %v114, 1.0
    %v117 = vadd.f32 %v115, 1.0
    %v118 = vmul.f32 %v110, %v116
    %v119 = vmul.f32 %v111, %v117
    %v120 = vld [vmem:[#allocation2] sm:$0xff]
    %v121 = vld [vmem:[#allocation2 + $0x8] sm:$0xff]
    %v122 = vld [vmem:[%s2] sm:$0xff]
    %v123 = vld [vmem:[%s2 + $0x8] sm:$0xff]
    %v124 = vld [vmem:[%s2 + $0x10] sm:$0xff]
    %v125 = vld [vmem:[%s2 + $0x18] sm:$0xff]
    %v126 = vld [vmem:[%s2 + $0x20] sm:$0xff]
    %v127 = vld [vmem:[%s2 + $0x28] sm:$0xff]
    %v128 = vld [vmem:[%s2 + $0x30] sm:$0xff]
    %v129 = vld [vmem:[%s2 + $0x38] sm:$0xff]
    %v130 = vld [vmem:[%s2 + $0x40] sm:$0xff]
    %v131 = vld [vmem:[%s2 + $0x48] sm:$0xff]
    %v132 = vld [vmem:[%s2 + $0x50] sm:$0xff]
    %v133 = vld [vmem:[%s2 + $0x58] sm:$0xff]
    %v134 = vld [vmem:[%s2 + $0x60] sm:$0xff]
    %v135 = vld [vmem:[%s2 + $0x68] sm:$0xff]
    %v136 = vld [vmem:[%s2 + $0x70] sm:$0xff]
    %v137 = vld [vmem:[%s2 + $0x78] sm:$0xff]
    %138 = vmatprep.subr.mxu0 0.0
    %139 = vmatpush1.msra.mxu0 %v137
    %140 = vmatprep.subr.mxu0 0.0
    %141 = vmatpush1.msra.mxu0 %v136
    %142 = vmatprep.subr.mxu0 0.0
    %143 = vmatpush1.msra.mxu0 %v135
    %144 = vmatprep.subr.mxu0 0.0
    %145 = vmatpush1.msra.mxu0 %v134
    %146 = vmatprep.subr.mxu0 0.0
    %147 = vmatpush1.msra.mxu0 %v133
    %148 = vmatprep.subr.mxu0 0.0
    %149 = vmatpush1.msra.mxu0 %v132
    %150 = vmatprep.subr.mxu0 0.0
    %151 = vmatpush1.msra.mxu0 %v131
    %152 = vmatprep.subr.mxu0 0.0
    %153 = vmatpush1.msra.mxu0 %v130
    %154 = vmatprep.subr.mxu0 0.0
    %155 = vmatpush1.msra.mxu0 %v129
    %156 = vmatprep.subr.mxu0 0.0
    %157 = vmatpush1.msra.mxu0 %v128
    %158 = vmatprep.subr.mxu0 0.0
    %159 = vmatpush1.msra.mxu0 %v127
    %160 = vmatprep.subr.mxu0 0.0
    %161 = vmatpush1.msra.mxu0 %v126
    %162 = vmatprep.subr.mxu0 0.0
    %163 = vmatpush1.msra.mxu0 %v125
    %164 = vmatprep.subr.mxu0 0.0
    %165 = vmatpush1.msra.mxu0 %v124
    %166 = vmatprep.subr.mxu0 0.0
    %167 = vmatpush1.msra.mxu0 %v123
    %168 = vmatprep.subr.mxu0 0.0
    %169 = vmatpush1.msra.mxu0 %v122
    %170 = vmatprep.subr.mxu0 0.0
    %171 = vmatpush2.msra.mxu0 0.0
    %172 = vmatprep.subr.mxu0 0.0
    %173 = vmatpush2.msra.mxu0 0.0
    %174 = vmatprep.subr.mxu0 0.0
    %175 = vmatpush2.msra.mxu0 0.0
    %176 = vmatprep.subr.mxu0 0.0
    %177 = vmatpush2.msra.mxu0 0.0
    %178 = vmatprep.subr.mxu0 0.0
    %179 = vmatpush2.msra.mxu0 0.0
    %180 = vmatprep.subr.mxu0 0.0
    %181 = vmatpush2.msra.mxu0 0.0
    %182 = vmatprep.subr.mxu0 0.0
    %183 = vmatpush2.msra.mxu0 0.0
    %184 = vmatprep.subr.mxu0 0.0
    %185 = vmatpush2.msra.mxu0 0.0
    %186 = vmatprep.subr.mxu0 0.0
    %187 = vmatpush2.msra.mxu0 0.0
    %188 = vmatprep.subr.mxu0 0.0
    %189 = vmatpush2.msra.mxu0 0.0
    %190 = vmatprep.subr.mxu0 0.0
    %191 = vmatpush2.msra.mxu0 0.0
    %192 = vmatprep.subr.mxu0 0.0
    %193 = vmatpush2.msra.mxu0 0.0
    %194 = vmatprep.subr.mxu0 0.0
    %195 = vmatpush2.msra.mxu0 0.0
    %196 = vmatprep.subr.mxu0 0.0
    %197 = vmatpush2.msra.mxu0 0.0
    %198 = vmatprep.subr.mxu0 0.0
    %199 = vmatpush2.msra.mxu0 0.0
    %200 = vmatprep.subr.mxu0 0.0
    %201 = vmatpush2.msra.mxu0 0.0
    %202 = vmatprep.mubr.f32.mxu0 0.0
    %203 = vmatmul.mubr.f32.gmra.mxu0 %v118
    %v204 = vpop.f32.mrf.mxu0
    %v205 = vadd.f32 0.0, %v204
    %v206 = vpop.f32.mrf.mxu0
    %207 = vmatprep.mubr.f32.mxu0 0.0
    %208 = vmatmul.mubr.f32.gmra.mxu0 %v119
    %v209 = vpop.f32.mrf.mxu0
    %v210 = vadd.f32 0.0, %v209
    %v211 = vpop.f32.mrf.mxu0
    %212 = vdwg.mxu0
    %v213 = vadd.f32 %v120, %v205
    %v214 = vadd.f32 %v121, %v210
    %215 = vst.msk [vmem:[#allocation2] sm:$0xff] %vm28, %v213
    %216 = vst.msk [vmem:[#allocation2 + $0x8] sm:$0xff] %vm28, %v214
    // Predicated region
    $region18: #{ffn_pallas.1} parent=1 // pred_check
      _
    $region19: #{ffn_pallas.1} parent=1 // pred_check_branch
      %218 = sbr.rel (0) target = $region21
    $region20: #{ffn_pallas.1} parent=1 // pred_region
      %s220 = ssub.s32 256, 256
      %221 = vsyncadd [#allocation3], %s220
      %s222 = sshll.u32 [#allocation2], 4
      %s223 = int_to_ptr.vmem [resolvable:$true] %s222
      %228 = dma.vmem_to_hbm [thread:$0]  %s223, 256, %s3, [#allocation3], 128, 128, 8
    $region21: #{ffn_pallas.1} parent=1 // pred_fallthru
      _
    // Predicated region
    $region22: #{ffn_pallas.1} parent=1 // pred_check
      _
    $region23: #{ffn_pallas.1} parent=1 // pred_check_branch
      %230 = sbr.rel (0) target = $region25
    $region24: #{ffn_pallas.1} parent=1 // pred_region
      %231 = dma.done [#allocation3], 256
    $region25: #{ffn_pallas.1} parent=1 // pred_fallthru
      _
    %232 = vsyncpa [#allocation3], 1

</llo_original>
